<compile_context>
chip_gen: v6e
topology: v6e:2x2x1
jax: 0.10.0
libtpu: 0.0.40
codegen_flags: <defaults>
</compile_context>

<pallas_src>
import functools

import jax
import jax.numpy as jnp
from jax import lax
from jax.experimental import pallas as pl
from jax.experimental.pallas import tpu as pltpu

EPS = 1e-5
_MIB = 1024 * 1024


# ---------------------------------------------------------------------------
# Generation-aware sizing
# ---------------------------------------------------------------------------
def _round_down(x, m):
    return (x // m) * m


def _vmem_limit_bytes():
    """Scoped-VMEM limit derived from the chip's physical VMEM capacity."""
    cap = None
    try:
        cap = getattr(pltpu.get_tpu_info(), "vmem_capacity_bytes", None)
    except Exception:
        cap = None
    if not cap:
        cap = 64 * _MIB  # conservative default = v7x per-TensorCore physical VMEM
    # v5e/v6e (128 MiB) -> 64 MiB scoped; v7x (64 MiB) -> 48 MiB scoped.
    return int(min(64 * _MIB, (cap * 3) // 4))


def _block_budget_bytes(vmem_limit):
    """Budget for ONE f32 x-block.  Real per-step working set is roughly
    2x double-buffered input + 2x double-buffered output + f32 cast +
    centered temporary ~= 7 f32 blocks."""
    return int(max(2 * _MIB, min(8 * _MIB, vmem_limit // 7)))


def _choose_fm_tiles(B, T, C, budget):
    """Feature-major tiles (Bb, TC, TT).  TT == T means whole-T single pass."""
    if C * T * 4 <= budget:
        tc = C                                    # whole feature dim in one block
    elif C >= 128:
        tc = max(128, _round_down(min(budget // (T * 4), C), 128))
    else:
        tc = C                                    # C < 128: lane dim must equal full C
    if T * tc * 4 <= budget:
        tt = T                                    # whole-T, single fused pass
        bb = max(1, min(B, budget // (T * tc * 4)))
    else:
        # T-tiled fallback for long sequences (T becomes an 'arbitrary' axis).
        tt = min(T, max(8, _round_down(budget // (tc * 4), 8)))
        bb = 1
    # v7x has 2 TensorCores: make sure some 'parallel' axis has >= 2 steps.
    if pl.cdiv(B, bb) * pl.cdiv(C, tc) < 2:
        if B > 1:
            bb = (B + 1) // 2
        elif C % 128 == 0 and tc >= 256:
            tc = _round_down(tc // 2, 128)
    return bb, tc, tt


def _choose_cm_tiles(B, T, C, budget):
    """Channel-major batch tile (whole [C, T] slab per batch row)."""
    bb = max(1, min(B, budget // (C * T * 4)))
    if pl.cdiv(B, bb) < 2 and B > 1:
        bb = (B + 1) // 2
    return bb


# ---------------------------------------------------------------------------
# Kernels
# ---------------------------------------------------------------------------
def _norm_fm_kernel(x_ref, w_ref, b_ref, y_ref, stats_ref, *, eps):
    """Feature-major [Bb, T, TC] block; whole T resident -> one fused pass."""
    x = x_ref[...].astype(jnp.float32)
    mean = jnp.mean(x, axis=1, keepdims=True)             # (Bb, 1, TC)
    xc = x - mean                                         # centered; reused
    var = jnp.mean(xc * xc, axis=1, keepdims=True)        # biased variance
    std = jnp.sqrt(var + eps)
    inv_std = 1.0 / std                                   # exact (tight tolerance)
    w = w_ref[...].astype(jnp.float32)                    # (1, TC)
    b = b_ref[...].astype(jnp.float32)
    y_ref[...] = (xc * (inv_std * w) + b).astype(y_ref.dtype)
    stats_ref[:, 0:1, :] = mean                           # fused mean/std output
    stats_ref[:, 1:2, :] = std


def _norm_cm_kernel(x_ref, w_ref, b_ref, y_ref, mean_ref, std_ref, *, eps):
    """Channel-major [Bb, C, T] block (T on lanes); lane reduction on the XLU."""
    x = x_ref[...].astype(jnp.float32)
    mean = jnp.mean(x, axis=2, keepdims=True)             # (Bb, C, 1)
    xc = x - mean
    var = jnp.mean(xc * xc, axis=2, keepdims=True)
    std = jnp.sqrt(var + eps)
    inv_std = 1.0 / std
    w = w_ref[...].astype(jnp.float32)                    # (C, 1)
    b = b_ref[...].astype(jnp.float32)
    y_ref[...] = (xc * (inv_std * w) + b).astype(y_ref.dtype)
    mean_ref[...] = mean
    std_ref[...] = std


def _stats_fm_kernel(x_ref, stats_ref, sum_ref, sq_ref, *, eps, t_total, t_tile):
    """T-tiled statistics: accumulate sum / sum-of-squares over the 'arbitrary'
    T grid axis; finalize mean/std on the last T tile."""
    t = pl.program_id(2)

    @pl.when(t == 0)
    def _():
        sum_ref[...] = jnp.zeros_like(sum_ref)
        sq_ref[...] = jnp.zeros_like(sq_ref)

    x = x_ref[...].astype(jnp.float32)                    # (Bb, TT, TC)
    if t_total % t_tile != 0:
        # Boundary T tile: mask padded rows so they cannot pollute the stats.
        rows = lax.broadcasted_iota(jnp.int32, x.shape, 1)
        x = jnp.where(rows < (t_total - t * t_tile), x, 0.0)
    sum_ref[...] += jnp.sum(x, axis=1, keepdims=True)
    sq_ref[...] += jnp.sum(x * x, axis=1, keepdims=True)

    @pl.when(t == pl.num_programs(2) - 1)
    def _():
        inv_n = 1.0 / t_total
        mean = sum_ref[...] * inv_n
        var = jnp.maximum(sq_ref[...] * inv_n - mean * mean, 0.0)
        stats_ref[:, 0:1, :] = mean
        stats_ref[:, 1:2, :] = jnp.sqrt(var + eps)


def _apply_norm_kernel(x_ref, w_ref, b_ref, stats_ref, y_ref):
    """Elementwise normalize with precomputed stats (T-tiled second pass)."""
    x = x_ref[...].astype(jnp.float32)
    mean = stats_ref[:, 0:1, :]
    std = stats_ref[:, 1:2, :]
    w = w_ref[...].astype(jnp.float32)
    b = b_ref[...].astype(jnp.float32)
    y_ref[...] = ((x - mean) * ((1.0 / std) * w) + b).astype(y_ref.dtype)


def _denorm_fm_kernel(x_ref, w_ref, b_ref, mean_ref, std_ref, y_ref, *, eps):
    x = x_ref[...].astype(jnp.float32)
    w = w_ref[...].astype(jnp.float32)                    # (1, TC)
    b = b_ref[...].astype(jnp.float32)
    inv_w = 1.0 / (w + eps * eps)
    scale = std_ref[...].astype(jnp.float32) * inv_w      # (Bb, 1, TC)
    y_ref[...] = ((x - b) * scale + mean_ref[...].astype(jnp.float32)).astype(y_ref.dtype)


def _denorm_cm_kernel(x_ref, w_ref, b_ref, mean_ref, std_ref, y_ref, *, eps):
    x = x_ref[...].astype(jnp.float32)                    # (Bb, C, T)
    w = w_ref[...].astype(jnp.float32)                    # (C, 1)
    b = b_ref[...].astype(jnp.float32)
    inv_w = 1.0 / (w + eps * eps)
    scale = std_ref[...].astype(jnp.float32) * inv_w      # (Bb, C, 1)
    y_ref[...] = ((x - b) * scale + mean_ref[...].astype(jnp.float32)).astype(y_ref.dtype)


# ---------------------------------------------------------------------------
# Wrappers
# ---------------------------------------------------------------------------
def revin_norm(x, weight, bias, eps=EPS, block_budget_bytes=None):
    """x: [B, T, C]; weight/bias: [C].  Returns (y, mean, stdev) with
    mean/stdev shaped [B, 1, C] (PyTorch RevIN convention)."""
    B, T, C = x.shape
    vmem_limit = _vmem_limit_bytes()
    budget = int(block_budget_bytes) if block_budget_bytes else _block_budget_bytes(vmem_limit)
    itemsize = jnp.dtype(x.dtype).itemsize
    cost = pl.CostEstimate(
        flops=int(7 * B * T * C), transcendentals=int(2 * B * C),
        bytes_accessed=int(2 * B * T * C * itemsize + 8 * B * C + 8 * C))

    # --- channel-major (lane-dense) path for narrow C --------------------
    if C < 128 and T >= 128 and C * T * 4 <= budget:
        Bb = _choose_cm_tiles(B, T, C, budget)
        nb = pl.cdiv(B, Bb)
        x_cm = jnp.transpose(x, (0, 2, 1))                 # [B, C, T], T on lanes
        w2 = weight.reshape(C, 1)
        b2 = bias.reshape(C, 1)
        y_cm, mean_cm, std_cm = pl.pallas_call(
            functools.partial(_norm_cm_kernel, eps=eps),
            out_shape=(jax.ShapeDtypeStruct((B, C, T), x.dtype),
                       jax.ShapeDtypeStruct((B, C, 1), jnp.float32),
                       jax.ShapeDtypeStruct((B, C, 1), jnp.float32)),
            grid_spec=pltpu.PrefetchScalarGridSpec(
                num_scalar_prefetch=0, grid=(nb,),
                in_specs=[pl.BlockSpec((Bb, C, T), lambda bi: (bi, 0, 0)),
                          pl.BlockSpec((C, 1), lambda bi: (0, 0)),
                          pl.BlockSpec((C, 1), lambda bi: (0, 0))],
                out_specs=[pl.BlockSpec((Bb, C, T), lambda bi: (bi, 0, 0)),
                           pl.BlockSpec((Bb, C, 1), lambda bi: (bi, 0, 0)),
                           pl.BlockSpec((Bb, C, 1), lambda bi: (bi, 0, 0))]),
            compiler_params=pltpu.CompilerParams(
                dimension_semantics=("parallel",), vmem_limit_bytes=vmem_limit),
            cost_estimate=cost,
        )(x_cm, w2, b2)
        y = jnp.transpose(y_cm, (0, 2, 1))
        mean = jnp.transpose(mean_cm, (0, 2, 1))
        std = jnp.transpose(std_cm, (0, 2, 1))
        return y, mean, std

    # --- feature-major path ----------------------------------------------
    Bb, TC, TT = _choose_fm_tiles(B, T, C, budget)
    nb, nc = pl.cdiv(B, Bb), pl.cdiv(C, TC)
    w2 = weight.reshape(1, C)
    b2 = bias.reshape(1, C)

    if TT == T:
        # Whole-T block resident: single fused pass.
        y, stats = pl.pallas_call(
            functools.partial(_norm_fm_kernel, eps=eps),
            out_shape=(jax.ShapeDtypeStruct((B, T, C), x.dtype),
                       jax.ShapeDtypeStruct((B, 2, C), jnp.float32)),
            grid_spec=pltpu.PrefetchScalarGridSpec(
                num_scalar_prefetch=0,
                grid=(nc, nb),      # batch innermost: w/b blocks not re-DMA'd
                in_specs=[pl.BlockSpec((Bb, T, TC), lambda ci, bi: (bi, 0, ci)),
                          pl.BlockSpec((1, TC), lambda ci, bi: (0, ci)),
                          pl.BlockSpec((1, TC), lambda ci, bi: (0, ci))],
                out_specs=[pl.BlockSpec((Bb, T, TC), lambda ci, bi: (bi, 0, ci)),
                           pl.BlockSpec((Bb, 2, TC), lambda ci, bi: (bi, 0, ci))]),
            compiler_params=pltpu.CompilerParams(
                dimension_semantics=("parallel", "parallel"),
                vmem_limit_bytes=vmem_limit),
            cost_estimate=cost,
        )(x, w2, b2)
    else:
        # T-tiled fallback: stats pass (accumulate) + elementwise apply pass.
        nt = pl.cdiv(T, TT)
        stats = pl.pallas_call(
            functools.partial(_stats_fm_kernel, eps=eps, t_total=T, t_tile=TT),
            out_shape=jax.ShapeDtypeStruct((B, 2, C), jnp.float32),
            grid_spec=pltpu.PrefetchScalarGridSpec(
                num_scalar_prefetch=0, grid=(nc, nb, nt),
                in_specs=[pl.BlockSpec((Bb, TT, TC), lambda ci, bi, ti: (bi, ti, ci))],
                out_specs=pl.BlockSpec((Bb, 2, TC), lambda ci, bi, ti: (bi, 0, ci)),
                scratch_shapes=[pltpu.VMEM((Bb, 1, TC), jnp.float32),
                                pltpu.VMEM((Bb, 1, TC), jnp.float32)]),
            compiler_params=pltpu.CompilerParams(
                dimension_semantics=("parallel", "parallel", "arbitrary"),
                vmem_limit_bytes=vmem_limit),
            cost_estimate=pl.CostEstimate(
                flops=int(3 * B * T * C), transcendentals=int(B * C),
                bytes_accessed=int(B * T * C * itemsize + 8 * B * C)),
        )(x)
        y = pl.pallas_call(
            _apply_norm_kernel,
            out_shape=jax.ShapeDtypeStruct((B, T, C), x.dtype),
            grid_spec=pltpu.PrefetchScalarGridSpec(
                num_scalar_prefetch=0, grid=(nc, nb, nt),
                in_specs=[pl.BlockSpec((Bb, TT, TC), lambda ci, bi, ti: (bi, ti, ci)),
                          pl.BlockSpec((1, TC), lambda ci, bi, ti: (0, ci)),
                          pl.BlockSpec((1, TC), lambda ci, bi, ti: (0, ci)),
                          pl.BlockSpec((Bb, 2, TC), lambda ci, bi, ti: (bi, 0, ci))],
                out_specs=pl.BlockSpec((Bb, TT, TC), lambda ci, bi, ti: (bi, ti, ci))),
            compiler_params=pltpu.CompilerParams(
                dimension_semantics=("parallel", "parallel", "parallel"),
                vmem_limit_bytes=vmem_limit),
            cost_estimate=cost,
        )(x, w2, b2, stats)

    mean = stats[:, 0:1, :]
    std = stats[:, 1:2, :]
    return y, mean, std


def revin_denorm(x, weight, bias, mean, std, eps=EPS, block_budget_bytes=None):
    """x: [B, T, C]; mean/std: [B, 1, C]; weight/bias: [C]."""
    B, T, C = x.shape
    vmem_limit = _vmem_limit_bytes()
    budget = int(block_budget_bytes) if block_budget_bytes else _block_budget_bytes(vmem_limit)
    itemsize = jnp.dtype(x.dtype).itemsize
    mean = mean.reshape(B, 1, C).astype(jnp.float32)
    std = std.reshape(B, 1, C).astype(jnp.float32)
    cost = pl.CostEstimate(
        flops=int(4 * B * T * C), transcendentals=int(C),
        bytes_accessed=int(2 * B * T * C * itemsize + 8 * B * C + 8 * C))

    if C < 128 and T >= 128 and C * T * 4 <= budget:
        Bb = _choose_cm_tiles(B, T, C, budget)
        nb = pl.cdiv(B, Bb)
        x_cm = jnp.transpose(x, (0, 2, 1))
        w2 = weight.reshape(C, 1)
        b2 = bias.reshape(C, 1)
        mean_cm = jnp.transpose(mean, (0, 2, 1))
        std_cm = jnp.transpose(std, (0, 2, 1))
        y_cm = pl.pallas_call(
            functools.partial(_denorm_cm_kernel, eps=eps),
            out_shape=jax.ShapeDtypeStruct((B, C, T), x.dtype),
            grid_spec=pltpu.PrefetchScalarGridSpec(
                num_scalar_prefetch=0, grid=(nb,),
                in_specs=[pl.BlockSpec((Bb, C, T), lambda bi: (bi, 0, 0)),
                          pl.BlockSpec((C, 1), lambda bi: (0, 0)),
                          pl.BlockSpec((C, 1), lambda bi: (0, 0)),
                          pl.BlockSpec((Bb, C, 1), lambda bi: (bi, 0, 0)),
                          pl.BlockSpec((Bb, C, 1), lambda bi: (bi, 0, 0))],
                out_specs=pl.BlockSpec((Bb, C, T), lambda bi: (bi, 0, 0))),
            compiler_params=pltpu.CompilerParams(
                dimension_semantics=("parallel",), vmem_limit_bytes=vmem_limit),
            cost_estimate=cost,
        )(x_cm, w2, b2, mean_cm, std_cm)
        return jnp.transpose(y_cm, (0, 2, 1))

    Bb, TC, TT = _choose_fm_tiles(B, T, C, budget)
    nb, nc, nt = pl.cdiv(B, Bb), pl.cdiv(C, TC), pl.cdiv(T, TT)
    w2 = weight.reshape(1, C)
    b2 = bias.reshape(1, C)
    y = pl.pallas_call(
        functools.partial(_denorm_fm_kernel, eps=eps),
        out_shape=jax.ShapeDtypeStruct((B, T, C), x.dtype),
        grid_spec=pltpu.PrefetchScalarGridSpec(
            num_scalar_prefetch=0, grid=(nc, nb, nt),
            in_specs=[pl.BlockSpec((Bb, TT, TC), lambda ci, bi, ti: (bi, ti, ci)),
                      pl.BlockSpec((1, TC), lambda ci, bi, ti: (0, ci)),
                      pl.BlockSpec((1, TC), lambda ci, bi, ti: (0, ci)),
                      pl.BlockSpec((Bb, 1, TC), lambda ci, bi, ti: (bi, 0, ci)),
                      pl.BlockSpec((Bb, 1, TC), lambda ci, bi, ti: (bi, 0, ci))],
            out_specs=pl.BlockSpec((Bb, TT, TC), lambda ci, bi, ti: (bi, ti, ci))),
        compiler_params=pltpu.CompilerParams(
            dimension_semantics=("parallel", "parallel", "parallel"),
            vmem_limit_bytes=vmem_limit),
        cost_estimate=cost,
    )(x, w2, b2, mean, std)
    return y


# ---------------------------------------------------------------------------
# Pure-JAX reference (mirrors the PyTorch module exactly)
# ---------------------------------------------------------------------------
def revin_ref(x, weight, bias, eps=EPS):
    mean = jnp.mean(x, axis=1, keepdims=True)
    std = jnp.sqrt(jnp.var(x, axis=1, keepdims=True, ddof=0) + eps)
    y = (x - mean) / std
    y = y * weight + bias
    z = (y - bias) / (weight + eps * eps)
    z = z * std + mean
    return y, mean, std, z


# ---------------------------------------------------------------------------
if __name__ == "__main__":
    def run_case(B, T, C, budget=None, tol_y=1e-5, tol_stat=1e-6, tol_rec=1e-4):
        key = jax.random.PRNGKey(0)
        x = jax.random.normal(key, (B, T, C), dtype=jnp.float32)
        # Deterministic params, matching nn.Parameter(ones) / nn.Parameter(zeros).
        w = jnp.ones((C,), dtype=jnp.float32)
        b = jnp.zeros((C,), dtype=jnp.float32)
        # mode='norm' (computes statistics + normalizes)
        y, mean, std = revin_norm(x, w, b, block_budget_bytes=budget)
        # mode='denorm' (uses stored statistics)
        x_rec = revin_denorm(y, w, b, mean, std, block_budget_bytes=budget)
        jax.block_until_ready((y, mean, std, x_rec))
        y_r, mean_r, std_r, x_rec_r = revin_ref(x, w, b)
        assert jnp.allclose(y, y_r, atol=tol_y, rtol=tol_y), (B, T, C)
        assert jnp.allclose(mean, mean_r, atol=tol_stat, rtol=tol_stat), (B, T, C)
        assert jnp.allclose(std, std_r, atol=tol_stat, rtol=tol_stat), (B, T, C)
        assert jnp.allclose(x_rec, x_rec_r, atol=tol_rec, rtol=tol_rec), (B, T, C)
        assert jnp.allclose(x_rec, x, atol=tol_rec, rtol=tol_rec), (B, T, C)

    # 1) original small shape: feature-major, whole-T, single fused pass.
    run_case(2, 8, 32)
    # 2) narrow C / long T: channel-major lane-dense path (wrapper transpose).
    run_case(2, 256, 32, tol_y=2e-5, tol_stat=2e-5)
    # 3) forced tiny budget: exercises the T-tiled stats+apply fallback path.
    run_case(2, 520, 128, budget=128 * 1024, tol_y=2e-5, tol_stat=2e-5)

    print("KERNEL_OK")
</pallas_src>

<mosaic_0001>
module attributes {stable_mosaic.version = 11 : i64} {
  func.func @_norm_fm_kernel(%arg0: i32, %arg1: i32, %arg2: memref<1x8x32xf32, #tpu.memory_space<vmem>>, %arg3: memref<1x32xf32, #tpu.memory_space<vmem>>, %arg4: memref<1x32xf32, #tpu.memory_space<vmem>>, %arg5: memref<1x8x32xf32, #tpu.memory_space<vmem>>, %arg6: memref<1x2x32xf32, #tpu.memory_space<vmem>>) attributes {dimension_semantics = [#tpu.dimension_semantics<parallel>, #tpu.dimension_semantics<parallel>], iteration_bounds = array<i64: 1, 2>, scalar_prefetch = 0 : i64, scratch_operands = 0 : i64, tpu.core_type = #tpu.core_type<tc>, window_params = [{transform_indices = @transform_0, window_bounds = array<i64: 1, 8, 32>}, {transform_indices = @transform_1, window_bounds = array<i64: 1, 32>}, {transform_indices = @transform_2, window_bounds = array<i64: 1, 32>}, {transform_indices = @transform_3, window_bounds = array<i64: 1, 8, 32>}, {transform_indices = @transform_4, window_bounds = array<i64: 1, 2, 32>}]} {
    %c0 = arith.constant 0 : index
    %c0_0 = arith.constant 0 : index
    %c0_1 = arith.constant 0 : index
    %0 = vector.load %arg2[%c0, %c0_0, %c0_1] : memref<1x8x32xf32, #tpu.memory_space<vmem>>, vector<1x8x32xf32>
    %cst = arith.constant dense<0.000000e+00> : vector<1x32xf32>
    %1 = vector.multi_reduction <add>, %0, %cst [1] : vector<1x8x32xf32> to vector<1x32xf32>
    %2 = vector.shape_cast %1 : vector<1x32xf32> to vector<1x1x32xf32>
    %cst_2 = arith.constant 8.000000e+00 : f32
    %3 = vector.broadcast %cst_2 : f32 to vector<1x1x32xf32>
    %4 = arith.divf %2, %3 : vector<1x1x32xf32>
    %5 = vector.broadcast %4 : vector<1x1x32xf32> to vector<1x8x32xf32>
    %6 = arith.subf %0, %5 : vector<1x8x32xf32>
    %7 = arith.mulf %6, %6 : vector<1x8x32xf32>
    %cst_3 = arith.constant dense<0.000000e+00> : vector<1x32xf32>
    %8 = vector.multi_reduction <add>, %7, %cst_3 [1] : vector<1x8x32xf32> to vector<1x32xf32>
    %9 = vector.shape_cast %8 : vector<1x32xf32> to vector<1x1x32xf32>
    %cst_4 = arith.constant 8.000000e+00 : f32
    %10 = vector.broadcast %cst_4 : f32 to vector<1x1x32xf32>
    %11 = arith.divf %9, %10 : vector<1x1x32xf32>
    %cst_5 = arith.constant 9.99999974E-6 : f32
    %12 = vector.broadcast %cst_5 : f32 to vector<1x1x32xf32>
    %13 = arith.addf %11, %12 : vector<1x1x32xf32>
    %14 = math.sqrt %13 : vector<1x1x32xf32>
    %cst_6 = arith.constant 1.000000e+00 : f32
    %15 = vector.broadcast %cst_6 : f32 to vector<1x1x32xf32>
    %16 = arith.divf %15, %14 : vector<1x1x32xf32>
    %c0_7 = arith.constant 0 : index
    %c0_8 = arith.constant 0 : index
    %17 = vector.load %arg3[%c0_7, %c0_8] : memref<1x32xf32, #tpu.memory_space<vmem>>, vector<1x32xf32>
    %c0_9 = arith.constant 0 : index
    %c0_10 = arith.constant 0 : index
    %18 = vector.load %arg4[%c0_9, %c0_10] : memref<1x32xf32, #tpu.memory_space<vmem>>, vector<1x32xf32>
    %19 = vector.shape_cast %17 : vector<1x32xf32> to vector<1x1x32xf32>
    %20 = arith.mulf %16, %19 : vector<1x1x32xf32>
    %21 = vector.broadcast %20 : vector<1x1x32xf32> to vector<1x8x32xf32>
    %22 = arith.mulf %6, %21 : vector<1x8x32xf32>
    %23 = vector.shape_cast %18 : vector<1x32xf32> to vector<1x1x32xf32>
    %24 = vector.broadcast %23 : vector<1x1x32xf32> to vector<1x8x32xf32>
    %25 = arith.addf %22, %24 : vector<1x8x32xf32>
    %c0_11 = arith.constant 0 : index
    %c0_12 = arith.constant 0 : index
    %c0_13 = arith.constant 0 : index
    %26 = vector.load %arg5[%c0_11, %c0_12, %c0_13] : memref<1x8x32xf32, #tpu.memory_space<vmem>>, vector<1x8x32xf32>
    tpu.vector_store %arg5[%c0_11, %c0_12, %c0_13], %25 {strides = array<i32>} : memref<1x8x32xf32, #tpu.memory_space<vmem>>, vector<1x8x32xf32>,
    %c0_14 = arith.constant 0 : index
    %c0_15 = arith.constant 0 : index
    %c0_16 = arith.constant 0 : index
    %27 = vector.load %arg6[%c0_14, %c0_15, %c0_16] : memref<1x2x32xf32, #tpu.memory_space<vmem>>, vector<1x1x32xf32>
    tpu.vector_store %arg6[%c0_14, %c0_15, %c0_16], %4 {strides = array<i32>} : memref<1x2x32xf32, #tpu.memory_space<vmem>>, vector<1x1x32xf32>,
    %c0_17 = arith.constant 0 : index
    %c1 = arith.constant 1 : index
    %c0_18 = arith.constant 0 : index
    %28 = vector.load %arg6[%c0_17, %c1, %c0_18] : memref<1x2x32xf32, #tpu.memory_space<vmem>>, vector<1x1x32xf32>
    tpu.vector_store %arg6[%c0_17, %c1, %c0_18], %14 {strides = array<i32>} : memref<1x2x32xf32, #tpu.memory_space<vmem>>, vector<1x1x32xf32>,
    return
  }
  func.func @transform_0(%arg0: i32, %arg1: i32) -> (i32, i32, i32) {
    %c0_i32 = arith.constant 0 : i32
    %c0_i32_0 = arith.constant 0 : i32
    return %arg1, %c0_i32, %arg0 : i32, i32, i32
  }
  func.func @transform_1(%arg0: i32, %arg1: i32) -> (i32, i32) {
    %c0_i32 = arith.constant 0 : i32
    %c0_i32_0 = arith.constant 0 : i32
    return %c0_i32, %arg0 : i32, i32
  }
  func.func @transform_2(%arg0: i32, %arg1: i32) -> (i32, i32) {
    %c0_i32 = arith.constant 0 : i32
    %c0_i32_0 = arith.constant 0 : i32
    return %c0_i32, %arg0 : i32, i32
  }
  func.func @transform_3(%arg0: i32, %arg1: i32) -> (i32, i32, i32) {
    %c0_i32 = arith.constant 0 : i32
    %c0_i32_0 = arith.constant 0 : i32
    return %arg1, %c0_i32, %arg0 : i32, i32, i32
  }
  func.func @transform_4(%arg0: i32, %arg1: i32) -> (i32, i32, i32) {
    %c0_i32 = arith.constant 0 : i32
    %c0_i32_0 = arith.constant 0 : i32
    return %arg1, %c0_i32, %arg0 : i32, i32, i32
  }
}

</mosaic_0001>

<llo_original>
// kernel: tpu_custom_call.1
$region0: #{tpu_custom_call.1}
  #allocation0 [shape = 'u32[]', space=smem, size = 0x4, offset = 0x4, fixed_abs, tag = 'smem constant byte address 0x4 - core index']
  #allocation1 [shape = 'u32[144,128]{1,0:T(1,128)}', space=vmem, size = 0x12000, scoped, tag = 'internal scratch']
  %s0 = inlined_call_operand.hbm [shape: f32[2,8,32], index: 0, kind: input, shape index: {}]
  %s1 = inlined_call_operand.vmem [shape: f32[1,32], index: 1, kind: input, shape index: {}]
  %s2 = inlined_call_operand.vmem [shape: f32[1,32], index: 2, kind: input, shape index: {}]
  %s3 = inlined_call_operand.hbm [shape: f32[2,8,32], index: 3, kind: output, shape index: {0}]
  %s4 = inlined_call_operand.hbm [shape: f32[2,2,32], index: 4, kind: output, shape index: {1}]
  %5 = xla_tuple %s3, %s4
  %s6 = sld [smem:[#allocation0]]
  $region57: #{tpu_custom_call.1} parent=0
    _
  %s8 = ssub.s32 1, %s6
  %s9 = scalar_select 0, %s8, %s6
  $region1: #{tpu_custom_call.1} parent=0
    #allocation2 [shape = 'u8[8192]{0}', space=vmem, size = 0x2000, scoped, tag = 'input window, operand 0']
    #allocation3 [shape = 's32[2]{0}', space=sflag, size = 0x8, scoped, tag = 'scoped memory for tpu_custom_call.1']
    #allocation4 [shape = 's32[2]{0}', space=sflag, size = 0x8, scoped, tag = 'scoped memory for tpu_custom_call.1']
    #allocation5 [shape = 'u8[8192]{0}', space=vmem, size = 0x2000, scoped, tag = 'output window, operand 0']
    #allocation6 [shape = 'u8[2048]{0}', space=vmem, size = 0x800, scoped, tag = 'output window, operand 1']
    #allocation7 [shape = 's32[2]{0}', space=sflag, size = 0x8, scoped, tag = 'scoped memory for tpu_custom_call.1']
    %10 = vsyncpa [#allocation3], 0
    %s11 = scalar_lea.sflag [#allocation3], 1
    %12 = vsyncpa %s11, 0
    %13 = vsyncpa [#allocation4], 0
    %s14 = scalar_lea.sflag [#allocation4], 1
    %15 = vsyncpa %s14, 0
    %16 = vsyncpa [#allocation7], 0
    %s17 = scalar_lea.sflag [#allocation7], 1
    %18 = vsyncpa %s17, 0
    loop: start=0, step=1, limit=4
    $region2: #{tpu_custom_call.1} parent=1 // loop_pre_header
      _
    $region3: #{tpu_custom_call.1} parent=1 // loop_header
      %s20 = sphi 0, %s24
      %p21 = scmp.ge.s32.totalorder %s20, 4
      %s27 = sphi 0, %s39
      %s28 = sphi 0, %s35
      %s29 = sphi 0, %s27
      %s30 = sphi 0, %s28
      %s31 = sphi 0, %s29
      %s32 = sphi 0, %s30
      %s44 = sphi 0, %s46
      %s47 = sphi 0, %s44
      %s48 = sphi 0, %s47
      %s64 = sphi 0, %s48
      %s70 = sphi 0, %s72
      %s73 = sphi 0, %s70
      %s74 = sphi 0, %s73
      %s90 = sphi 0, %s74
      %s96 = sphi 0, %s98
      %s99 = sphi 0, %s96
      %s100 = sphi 0, %s99
      %s116 = sphi 0, %s100
      %s124 = sphi 0, %s126
      %s127 = sphi 0, %s124
      %s128 = sphi 0, %s127
      %s144 = sphi 0, %s128
      %s152 = sphi 0, %s154
      %s155 = sphi 0, %s152
      %s156 = sphi 0, %s155
      %s172 = sphi 0, %s156
    $region4: #{tpu_custom_call.1} parent=1 // loop_header_branch
      %23 = sbr.rel (%p21) target = $region8
    $region5: #{tpu_custom_call.1} parent=1 // loop_body
      %s25 = ssub.s32 %s20, 1
      %s26 = ssub.s32 %s20, 2
      %s33 = sadd.s32 1, %s28
      %p34 = scmp.ge.s32.totalorder %s33, 2
      %s35 = scalar_select %p34, 0, %s33
      %s36 = sadd.s32 1, %s27
      %s37 = scalar_select %p34, %s36, %s27
      %p38 = scmp.ge.s32.totalorder %s37, 1
      %s39 = scalar_select %p38, 0, %s37
      %s40 = ssub.s32 %s28, %s35
      %s41 = ssub.s32 %s27, %s39
      %s42 = sor.u32 %s40, %s41
      %p43 = scmp.eq.s32.totalorder %s42, 0
      %s45 = sadd.s32 %s44, 1
      %s46 = scalar_select %p43, %s44, %s45
      %p49 = pneg %p43
      %p50 = scmp.eq.s32.totalorder %s20, 1
      %p51 = por %p49, %p50
      %p52 = scmp.ne.s32.totalorder %s44, %s47
      %p53 = scmp.eq.s32.totalorder %s20, 0
      %p54 = por %p52, %p53
      %p55 = scmp.ne.s32.totalorder %s44, %s47
      %p56 = scmp.eq.s32.totalorder %s25, 1
      %p57 = por %p55, %p56
      %p58 = scmp.ne.s32.totalorder %s47, %s48
      %p59 = scmp.eq.s32.totalorder %s25, 0
      %p60 = por %p58, %p59
      %p61 = scmp.ne.s32.totalorder %s47, %s48
      %p62 = scmp.eq.s32.totalorder %s26, 1
      %p63 = por %p61, %p62
      %p65 = scmp.ne.s32.totalorder %s48, %s64
      %p66 = scmp.eq.s32.totalorder %s26, 0
      %p67 = por %p65, %p66
      %s68 = ssub.s32 %s27, %s39
      %p69 = scmp.eq.s32.totalorder %s68, 0
      %s71 = sadd.s32 %s70, 1
      %s72 = scalar_select %p69, %s70, %s71
      %p75 = pneg %p69
      %p76 = scmp.eq.s32.totalorder %s20, 1
      %p77 = por %p75, %p76
      %p78 = scmp.ne.s32.totalorder %s70, %s73
      %p79 = scmp.eq.s32.totalorder %s20, 0
      %p80 = por %p78, %p79
      %p81 = scmp.ne.s32.totalorder %s70, %s73
      %p82 = scmp.eq.s32.totalorder %s25, 1
      %p83 = por %p81, %p82
      %p84 = scmp.ne.s32.totalorder %s73, %s74
      %p85 = scmp.eq.s32.totalorder %s25, 0
      %p86 = por %p84, %p85
      %p87 = scmp.ne.s32.totalorder %s73, %s74
      %p88 = scmp.eq.s32.totalorder %s26, 1
      %p89 = por %p87, %p88
      %p91 = scmp.ne.s32.totalorder %s74, %s90
      %p92 = scmp.eq.s32.totalorder %s26, 0
      %p93 = por %p91, %p92
      %s94 = ssub.s32 %s27, %s39
      %p95 = scmp.eq.s32.totalorder %s94, 0
      %s97 = sadd.s32 %s96, 1
      %s98 = scalar_select %p95, %s96, %s97
      %p101 = pneg %p95
      %p102 = scmp.eq.s32.totalorder %s20, 1
      %p103 = por %p101, %p102
      %p104 = scmp.ne.s32.totalorder %s96, %s99
      %p105 = scmp.eq.s32.totalorder %s20, 0
      %p106 = por %p104, %p105
      %p107 = scmp.ne.s32.totalorder %s96, %s99
      %p108 = scmp.eq.s32.totalorder %s25, 1
      %p109 = por %p107, %p108
      %p110 = scmp.ne.s32.totalorder %s99, %s100
      %p111 = scmp.eq.s32.totalorder %s25, 0
      %p112 = por %p110, %p111
      %p113 = scmp.ne.s32.totalorder %s99, %s100
      %p114 = scmp.eq.s32.totalorder %s26, 1
      %p115 = por %p113, %p114
      %p117 = scmp.ne.s32.totalorder %s100, %s116
      %p118 = scmp.eq.s32.totalorder %s26, 0
      %p119 = por %p117, %p118
      %s120 = ssub.s32 %s28, %s35
      %s121 = ssub.s32 %s27, %s39
      %s122 = sor.u32 %s120, %s121
      %p123 = scmp.eq.s32.totalorder %s122, 0
      %s125 = sadd.s32 %s124, 1
      %s126 = scalar_select %p123, %s124, %s125
      %p129 = pneg %p123
      %p130 = scmp.eq.s32.totalorder %s20, 1
      %p131 = por %p129, %p130
      %p132 = scmp.ne.s32.totalorder %s124, %s127
      %p133 = scmp.eq.s32.totalorder %s20, 0
      %p134 = por %p132, %p133
      %p135 = scmp.ne.s32.totalorder %s124, %s127
      %p136 = scmp.eq.s32.totalorder %s25, 1
      %p137 = por %p135, %p136
      %p138 = scmp.ne.s32.totalorder %s127, %s128
      %p139 = scmp.eq.s32.totalorder %s25, 0
      %p140 = por %p138, %p139
      %p141 = scmp.ne.s32.totalorder %s127, %s128
      %p142 = scmp.eq.s32.totalorder %s26, 1
      %p143 = por %p141, %p142
      %p145 = scmp.ne.s32.totalorder %s128, %s144
      %p146 = scmp.eq.s32.totalorder %s26, 0
      %p147 = por %p145, %p146
      %s148 = ssub.s32 %s28, %s35
      %s149 = ssub.s32 %s27, %s39
      %s150 = sor.u32 %s148, %s149
      %p151 = scmp.eq.s32.totalorder %s150, 0
      %s153 = sadd.s32 %s152, 1
      %s154 = scalar_select %p151, %s152, %s153
      %p157 = pneg %p151
      %p158 = scmp.eq.s32.totalorder %s20, 1
      %p159 = por %p157, %p158
      %p160 = scmp.ne.s32.totalorder %s152, %s155
      %p161 = scmp.eq.s32.totalorder %s20, 0
      %p162 = por %p160, %p161
      %p163 = scmp.ne.s32.totalorder %s152, %s155
      %p164 = scmp.eq.s32.totalorder %s25, 1
      %p165 = por %p163, %p164
      %p166 = scmp.ne.s32.totalorder %s155, %s156
      %p167 = scmp.eq.s32.totalorder %s25, 0
      %p168 = por %p166, %p167
      %p169 = scmp.ne.s32.totalorder %s155, %s156
      %p170 = scmp.eq.s32.totalorder %s26, 1
      %p171 = por %p169, %p170
      %p173 = scmp.ne.s32.totalorder %s156, %s172
      %p174 = scmp.eq.s32.totalorder %s26, 0
      %p175 = por %p173, %p174
      %p176 = scmp.le.s32.totalorder 1, %s20
      %p177 = scmp.lt.s32.totalorder %s20, 3
      %p178 = pnand %p176, %p177
      %p179 = pneg %p178
      // Predicated region
      $region9: #{tpu_custom_call.1} parent=5 // pred_check
        _
      $region10: #{tpu_custom_call.1} parent=5 // pred_check_branch
        %181 = sbr.rel (%p178) target = $region12
      $region11: #{tpu_custom_call.1} parent=5 // pred_region
        %s182 = ssub.s32 %s20, 1
        // Predicated region
        $region13: #{tpu_custom_call.1} parent=11 // pred_check
          %p183 = pneg %p86
        $region14: #{tpu_custom_call.1} parent=11 // pred_check_branch
          %185 = sbr.rel (%p183) target = $region16
        $region15: #{tpu_custom_call.1} parent=11 // pred_region
          %p186 = scmp.lt.s32.totalorder %s29, 0
          %s187 = scalar_select %p186, %s29, 0
          %s188 = scalar_lea.vmem %s1, %s187
        $region16: #{tpu_custom_call.1} parent=11 // pred_fallthru
          _
        // Predicated region
        $region17: #{tpu_custom_call.1} parent=11 // pred_check
          %p189 = pneg %p112
        $region18: #{tpu_custom_call.1} parent=11 // pred_check_branch
          %191 = sbr.rel (%p189) target = $region20
        $region19: #{tpu_custom_call.1} parent=11 // pred_region
          %p192 = scmp.lt.s32.totalorder %s29, 0
          %s193 = scalar_select %p192, %s29, 0
          %s194 = scalar_lea.vmem %s2, %s193
        $region20: #{tpu_custom_call.1} parent=11 // pred_fallthru
          _
      $region12: #{tpu_custom_call.1} parent=5 // pred_fallthru
        _
      %p195 = scmp.lt.s32.totalorder %s20, 2
      // Predicated region
      $region21: #{tpu_custom_call.1} parent=5 // pred_check
        %p196 = pneg %p195
      $region22: #{tpu_custom_call.1} parent=5 // pred_check_branch
        %198 = sbr.rel (%p196) target = $region24
      $region23: #{tpu_custom_call.1} parent=5 // pred_region
        // Predicated region
        $region25: #{tpu_custom_call.1} parent=23 // pred_check
          %p199 = pneg %p54
        $region26: #{tpu_custom_call.1} parent=23 // pred_check_branch
          %201 = sbr.rel (%p199) target = $region28
        $region27: #{tpu_custom_call.1} parent=23 // pred_region
          %s202 = sand.u32 %s44, 1
          %s203 = scalar_lea.sflag [#allocation3], %s202
          %s204 = sand.u32 %s44, 1
          %s205 = smul.addr %s204, 8
          %s206 = scalar_lea.vmem [#allocation2], %s205
          %s208 = ssub.s32 128, 128
          %209 = vsyncadd %s203, %s208
          %s210 = sadd.s32 %s27, %s28
          %s211 = smul.addr %s210, 128
          %s212 = scalar_lea.hbm %s0, %s211
          %s214 = sshll.u32 %s206, 4
          %s215 = int_to_ptr.vmem [resolvable:$true] %s214
          %217 = dma.hbm_to_vmem [thread:$0]  %s212, 128, %s215, %s203
        $region28: #{tpu_custom_call.1} parent=23 // pred_fallthru
          _
      $region24: #{tpu_custom_call.1} parent=5 // pred_fallthru
        _
      %p218 = scmp.le.s32.totalorder 1, %s20
      %p219 = scmp.lt.s32.totalorder %s20, 3
      %p220 = pnand %p218, %p219
      %p221 = pneg %p220
      // Predicated region
      $region29: #{tpu_custom_call.1} parent=5 // pred_check
        _
      $region30: #{tpu_custom_call.1} parent=5 // pred_check_branch
        %223 = sbr.rel (%p220) target = $region32
      $region31: #{tpu_custom_call.1} parent=5 // pred_region
        %s224 = ssub.s32 %s20, 1
        %s225 = sand.u32 %s47, 1
        %s226 = scalar_lea.sflag [#allocation3], %s225
        %s227 = sand.u32 %s47, 1
        %s228 = smul.addr %s227, 8
        %s229 = scalar_lea.vmem [#allocation2], %s228
        // Predicated region
        $region33: #{tpu_custom_call.1} parent=31 // pred_check
          %p230 = pneg %p60
        $region34: #{tpu_custom_call.1} parent=31 // pred_check_branch
          %232 = sbr.rel (%p230) target = $region36
        $region35: #{tpu_custom_call.1} parent=31 // pred_region
          %233 = dma.done %s226, 128
        $region36: #{tpu_custom_call.1} parent=31 // pred_fallthru
          _
        %s234 = sand.u32 %s47, 1
        %s235 = scalar_lea.sflag [#allocation3], %s234
        %s236 = sand.u32 %s47, 1
        %s237 = smul.addr %s236, 8
        %s238 = scalar_lea.vmem [#allocation2], %s237
        %p239 = pneg %p60
        %p240 = pneg %p57
        %p241 = scmp.lt.s32.totalorder %s29, 0
        %s242 = scalar_select %p241, %s29, 0
        %s243 = scalar_lea.vmem %s1, %s242
        %p244 = pneg %p86
        %p245 = pneg %p83
        %p246 = scmp.lt.s32.totalorder %s29, 0
        %s247 = scalar_select %p246, %s29, 0
        %s248 = scalar_lea.vmem %s2, %s247
        %p249 = pneg %p112
        %p250 = pneg %p109
        %p251 = pneg %p140
        %p252 = pneg %p137
        %s253 = sand.u32 %s127, 1
        %s254 = scalar_lea.sflag [#allocation4], %s253
        %s255 = sand.u32 %s127, 1
        %s256 = smul.addr %s255, 8
        %s257 = scalar_lea.vmem [#allocation5], %s256
        %p258 = pneg %p168
        %p259 = pneg %p165
        %s260 = sand.u32 %s155, 1
        %s261 = scalar_lea.sflag [#allocation7], %s260
        %s262 = sand.u32 %s155, 1
        %s263 = smul.addr %s262, 2
        %s264 = scalar_lea.vmem [#allocation6], %s263
        %p265 = scmp.lt.s32.totalorder %s29, 0
        %s266 = scalar_select %p265, %s29, 0
        %s267 = scalar_lea.vmem %s1, %s266
        %p268 = scmp.lt.s32.totalorder %s29, 0
        %s269 = scalar_select %p268, %s29, 0
        %s270 = scalar_lea.vmem %s2, %s269
        %v271 = vld [vmem:[%s229] sm:$0xff]
        %vm272 = vcmask 261120
        %v273 = vsel %vm272, %v271, 0.0
        %v274 = vrot.slane %v273, 4
        %v275 = vadd.f32 %v273, %v274
        %v276 = vrot.slane %v275, 2
        %v277 = vadd.f32 %v275, %v276
        %v278 = vrot.slane %v277, 1
        %v279 = vadd.f32 %v277, %v278
        %v280 = vrcp.pop 8.0
        %v281 = vmul.f32 %v279, %v280
        %v282 = vsub.f32 %v271, %v281
        %v283 = vmul.f32 %v282, %v282
        %v284 = vsel %vm272, %v283, 0.0
        %v285 = vrot.slane %v284, 4
        %v286 = vadd.f32 %v284, %v285
        %v287 = vrot.slane %v286, 2
        %v288 = vadd.f32 %v286, %v287
        %v289 = vrot.slane %v288, 1
        %v290 = vadd.f32 %v288, %v289
        %v291 = vmul.f32 %v290, %v280
        %v292 = vadd.f32 %v291, 1e-05
        %v293 = vrsqrt.pop %v292
        %v294 = vmul.f32 %v292, %v293
        %vm295 = vcmp.eq.f32.partialorder %v292, inf
        %v296 = vsel %vm295, %v292, %v294
        %vm297 = vcmp.eq.f32.partialorder %v292, 0.0
        %v298 = vand.u32 %v292, 2147483648
        %v299 = vsel %vm297, %v298, %v296
        %v300 = vrcp.pop %v299
        %v301 = vmul.f32 1.0, %v300
        %v302 = vld [vmem:[%s267] sm:$0x1]
        %v303 = vld [vmem:[%s270] sm:$0x1]
        %v304 = vmul.f32 %v301, %v302
        %v305 = vlaneseq
        %v306 = vshrl.u32 %v305, 7
        %v307 = vsub.s32 0, %v306
        %v308 = vrot.slane %v304, %v307
        %v309 = vmul.f32 %v282, %v308
        %v311 = vlaneseq
        %v312 = vshrl.u32 %v311, 7
        %v313 = vsub.s32 0, %v312
        %v314 = vrot.slane %v303, %v313
        %v316 = vadd.f32 %v309, %v314
        %317 = vst.msk [vmem:[%s257] sm:$0xff] %vm272, %v316
        %vm318 = vcmask 253952
        %319 = vst.msk [vmem:[%s264] sm:$0x1] %vm318, %v281
        %320 = vst.msk [vmem:[%s264 + $0x1] sm:$0x1] %vm318, %v299
        %s321 = sand.u32 %s127, 1
        %s322 = scalar_lea.sflag [#allocation4], %s321
        %s323 = sand.u32 %s127, 1
        %s324 = smul.addr %s323, 8
        %s325 = scalar_lea.vmem [#allocation5], %s324
        %s326 = sand.u32 %s155, 1
        %s327 = scalar_lea.sflag [#allocation7], %s326
        %s328 = sand.u32 %s155, 1
        %s329 = smul.addr %s328, 2
        %s330 = scalar_lea.vmem [#allocation6], %s329
        // Predicated region
        $region37: #{tpu_custom_call.1} parent=31 // pred_check
          %p331 = pneg %p137
        $region38: #{tpu_custom_call.1} parent=31 // pred_check_branch
          %333 = sbr.rel (%p331) target = $region40
        $region39: #{tpu_custom_call.1} parent=31 // pred_region
          %s335 = ssub.s32 128, 128
          %336 = vsyncadd %s322, %s335
          %s337 = sadd.s32 %s29, %s30
          %s338 = smul.addr %s337, 128
          %s339 = scalar_lea.hbm %s3, %s338
          %s341 = sshll.u32 %s325, 4
          %s342 = int_to_ptr.vmem [resolvable:$true] %s341
          %344 = dma.vmem_to_hbm [thread:$0]  %s342, 128, %s339, %s322
        $region40: #{tpu_custom_call.1} parent=31 // pred_fallthru
          _
        // Predicated region
        $region41: #{tpu_custom_call.1} parent=31 // pred_check
          %p345 = pneg %p165
        $region42: #{tpu_custom_call.1} parent=31 // pred_check_branch
          %347 = sbr.rel (%p345) target = $region44
        $region43: #{tpu_custom_call.1} parent=31 // pred_region
          %s349 = ssub.s32 32, 32
          %350 = vsyncadd %s327, %s349
          %s351 = sadd.s32 %s29, %s30
          %s352 = smul.addr %s351, 32
          %s353 = scalar_lea.hbm %s4, %s352
          %s355 = sshll.u32 %s330, 4
          %s356 = int_to_ptr.vmem [resolvable:$true] %s355
          %358 = dma.vmem_to_hbm [thread:$0]  %s356, 32, %s353, %s327
        $region44: #{tpu_custom_call.1} parent=31 // pred_fallthru
          _
      $region32: #{tpu_custom_call.1} parent=5 // pred_fallthru
        _
      %p359 = scmp.le.s32.totalorder 2, %s20
      // Predicated region
      $region45: #{tpu_custom_call.1} parent=5 // pred_check
        %p360 = pneg %p359
      $region46: #{tpu_custom_call.1} parent=5 // pred_check_branch
        %362 = sbr.rel (%p360) target = $region48
      $region47: #{tpu_custom_call.1} parent=5 // pred_region
        %s363 = ssub.s32 %s20, 2
        // Predicated region
        $region49: #{tpu_custom_call.1} parent=47 // pred_check
          %p364 = pneg %p143
        $region50: #{tpu_custom_call.1} parent=47 // pred_check_branch
          %366 = sbr.rel (%p364) target = $region52
        $region51: #{tpu_custom_call.1} parent=47 // pred_region
          %s367 = sand.u32 %s128, 1
          %s368 = scalar_lea.sflag [#allocation4], %s367
          %s369 = sand.u32 %s128, 1
          %s370 = smul.addr %s369, 8
          %s371 = scalar_lea.vmem [#allocation5], %s370
          %372 = dma.done %s368, 128
        $region52: #{tpu_custom_call.1} parent=47 // pred_fallthru
          _
        // Predicated region
        $region53: #{tpu_custom_call.1} parent=47 // pred_check
          %p373 = pneg %p171
        $region54: #{tpu_custom_call.1} parent=47 // pred_check_branch
          %375 = sbr.rel (%p373) target = $region56
        $region55: #{tpu_custom_call.1} parent=47 // pred_region
          %s376 = sand.u32 %s156, 1
          %s377 = scalar_lea.sflag [#allocation7], %s376
          %s378 = sand.u32 %s156, 1
          %s379 = smul.addr %s378, 2
          %s380 = scalar_lea.vmem [#allocation6], %s379
          %381 = dma.done %s377, 32
        $region56: #{tpu_custom_call.1} parent=47 // pred_fallthru
          _
      $region48: #{tpu_custom_call.1} parent=5 // pred_fallthru
        _
    $region6: #{tpu_custom_call.1} parent=1 // loop_footer
      %s24 = sadd.s32 1, %s20
    $region7: #{tpu_custom_call.1} parent=1 // loop_footer_branch
      %19 = sbr.rel target = $region3
    $region8: #{tpu_custom_call.1} parent=1 // loop_exit
      _
    %382 = vsyncpa [#allocation3], 1
    %s383 = scalar_lea.sflag [#allocation3], 1
    %384 = vsyncpa %s383, 1
    %385 = vsyncpa [#allocation4], 1
    %s386 = scalar_lea.sflag [#allocation4], 1
    %387 = vsyncpa %s386, 1
    %388 = vsyncpa [#allocation7], 1
    %s389 = scalar_lea.sflag [#allocation7], 1
    %390 = vsyncpa %s389, 1

</llo_original>
